<compile_context>
chip_gen: v7x
topology: tpu7x:2x2x1
jax: 0.10.0
libtpu: 0.0.40
codegen_flags: <defaults>
</compile_context>

<pallas_src>
import functools

import jax
import jax.numpy as jnp
from jax.experimental import pallas as pl
from jax.experimental.pallas import tpu as pltpu

BN_EPS = 1e-5
HP = 128  # lane-dense padded feature width


def _round_up(n, m):
    return ((n + m - 1) // m) * m


def dqn_kernel(x_ref, w_ref, v_ref, o_ref, *, in_rows, h_rows):
    """Two (Linear -> BN(train) -> PReLU) blocks + Linear head.

    x_ref : (B, in_rows) f32 input (feature dim zero-padded to a sublane multiple)
    w_ref : (in_rows + 2*h_rows, HP) f32 weight slab [W0p | W1p | Whp] stacked
            on rows.  W1p / Whp carry only h_rows = round_up(hidden, 8) rows;
            contracting them against h[:, :h_rows] is exact because padded
            lanes of h beyond `hidden` are exactly zero (zero gamma/beta pad).
    v_ref : (16, HP) f32 vector slab:
              rows 0..6 = b0, g0, bt0, b1, g1, bt1, bh
              rows 7, 8 = PReLU alpha0 / alpha1 broadcast across lanes
    o_ref : (B, HP) lane-dense output; real (B, output) slice taken outside.
    """
    x = x_ref[...].astype(jnp.float32)  # x = x.type(torch.float)

    def block(h, w, bias, gamma, beta, alpha):
        y = jnp.dot(h, w, preferred_element_type=jnp.float32) + bias       # (B, HP)
        # BatchNorm1d (training mode) fused into a single scale/shift.
        mean = jnp.mean(y, axis=0, keepdims=True)                          # (1, HP)
        var = jnp.maximum(                                                  # biased var,
            jnp.mean(y * y, axis=0, keepdims=True) - mean * mean, 0.0)      # clamped >= 0
        scale = gamma * jax.lax.rsqrt(var + BN_EPS)
        shift = beta - mean * scale
        y = y * scale + shift
        # PReLU with a single shared alpha (lane-broadcast row of the v-slab).
        return jnp.where(y > 0.0, y, alpha * y)

    r0, r1, r2 = in_rows, in_rows + h_rows, in_rows + 2 * h_rows

    h = block(x,
              w_ref[0:r0, :],
              v_ref[0:1, :], v_ref[1:2, :], v_ref[2:3, :],
              v_ref[7:8, :])
    h = block(h[:, :h_rows],
              w_ref[r0:r1, :],
              v_ref[3:4, :], v_ref[4:5, :], v_ref[5:6, :],
              v_ref[8:9, :])
    # Head: full-lane (B, HP) store (no masked vst).
    o_ref[...] = (jnp.dot(h[:, :h_rows], w_ref[r1:r2, :],
                          preferred_element_type=jnp.float32)
                  + v_ref[6:7, :])


def pack_params(p, input_size, hidden, output_size):
    """Pack PyTorch-layout params into one weight slab + one vector slab.

    Invariant (relied on by the slim W1/Wh slab): gamma/beta padding beyond
    `hidden` is exactly zero, so padded lanes of h stay exactly 0 through
    BN and PReLU.
    """
    in_rows = _round_up(input_size, 8)
    h_rows = _round_up(hidden, 8)

    w0p = jnp.zeros((in_rows, HP), jnp.float32).at[:input_size, :hidden].set(p["w0"])
    w1p = jnp.zeros((h_rows, HP), jnp.float32).at[:hidden, :hidden].set(p["w1"])
    whp = jnp.zeros((h_rows, HP), jnp.float32).at[:hidden, :output_size].set(p["wh"])
    w_slab = jnp.concatenate([w0p, w1p, whp], axis=0)      # (in_rows + 2*h_rows, HP)

    v = jnp.zeros((16, HP), jnp.float32)
    v = v.at[0, :hidden].set(p["b0"])
    v = v.at[1, :hidden].set(p["g0"])      # gamma, zero-padded (keep invariant!)
    v = v.at[2, :hidden].set(p["bt0"])     # beta,  zero-padded (keep invariant!)
    v = v.at[3, :hidden].set(p["b1"])
    v = v.at[4, :hidden].set(p["g1"])
    v = v.at[5, :hidden].set(p["bt1"])
    v = v.at[6, :output_size].set(p["bh"])
    v = v.at[7, :].set(p["a0"])            # PReLU alphas, lane-broadcast
    v = v.at[8, :].set(p["a1"])

    return dict(w=w_slab, v=v, in_rows=in_rows, h_rows=h_rows)


def dqn_forward(x, packed, output_size):
    batch, input_size = x.shape
    in_rows = packed["in_rows"]
    if input_size != in_rows:  # pad feature dim to a sublane multiple (no-op here)
        x = jnp.pad(x, ((0, 0), (0, in_rows - input_size)))

    kernel = functools.partial(dqn_kernel,
                               in_rows=in_rows, h_rows=packed["h_rows"])
    vmem = pl.BlockSpec(memory_space=pltpu.MemorySpace.VMEM)
    out_padded = pl.pallas_call(
        kernel,
        out_shape=jax.ShapeDtypeStruct((batch, HP), jnp.float32),
        in_specs=[vmem, vmem, vmem],
        out_specs=vmem,
        # For very large batches on v5e, raise vmem_limit_bytes via
        # pltpu.CompilerParams; unnecessary at this footprint (~40 KiB).
    )(x, packed["w"], packed["v"])
    # Lane-dense output is right at small batch; consumers reading the padded
    # buffer directly (e.g. argmax over Q-values) would kill this slice op.
    return out_padded[:, :output_size]


def init_params(key, input_size, output_size, hidden):
    """Deterministic synthetic parameters matching the PyTorch module shapes."""
    ks = jax.random.split(key, 8)

    def linear(kw, kb, fan_in, fan_out):
        bound = 1.0 / jnp.sqrt(fan_in)
        w = jax.random.uniform(kw, (fan_out, fan_in), jnp.float32, -bound, bound)
        b = jax.random.uniform(kb, (fan_out,), jnp.float32, -bound, bound)
        return w.T, b                      # pre-transposed to (in, out)

    w0, b0 = linear(ks[0], ks[1], input_size, hidden)
    w1, b1 = linear(ks[2], ks[3], hidden, hidden)
    wh, bh = linear(ks[4], ks[5], hidden, output_size)

    g0 = 1.0 + 0.1 * jax.random.normal(ks[6], (hidden,), jnp.float32)
    g1 = 1.0 + 0.1 * jax.random.normal(ks[7], (hidden,), jnp.float32)
    bt0 = jnp.full((hidden,), 0.05, jnp.float32)
    bt1 = jnp.full((hidden,), -0.05, jnp.float32)

    # PReLU default init = 0.25 (single shared parameter)
    a0 = 0.25
    a1 = 0.25

    return dict(w0=w0, b0=b0, g0=g0, bt0=bt0, a0=a0,
                w1=w1, b1=b1, g1=g1, bt1=bt1, a1=a1,
                wh=wh, bh=bh)


def dqn_reference(x, p):
    """Pure-JAX reference mirroring the PyTorch forward (training-mode BN)."""
    h = x.astype(jnp.float32)
    for (w, b, g, bt, a) in ((p["w0"], p["b0"], p["g0"], p["bt0"], p["a0"]),
                             (p["w1"], p["b1"], p["g1"], p["bt1"], p["a1"])):
        y = h @ w + b
        mean = jnp.mean(y, axis=0, keepdims=True)
        var = jnp.mean((y - mean) ** 2, axis=0, keepdims=True)
        y = (y - mean) / jnp.sqrt(var + BN_EPS) * g + bt
        h = jnp.where(y > 0, y, a * y)
    return h @ p["wh"] + p["bh"]


if __name__ == "__main__":
    # DQN(input_size=32, output_size=4, num_hidden_layers=2, hidden_layer_size=16)
    input_size, output_size, hidden = 32, 4, 16
    batch = 8

    key = jax.random.PRNGKey(0)
    kx, kp = jax.random.split(key)
    x = jax.random.normal(kx, (batch, input_size), jnp.float32)

    raw = init_params(kp, input_size, output_size, hidden)
    packed = pack_params(raw, input_size, hidden, output_size)

    out = dqn_forward(x, packed, output_size)
    out = jax.block_until_ready(out)

    ref = dqn_reference(x, raw)
    assert out.shape == (batch, output_size)
    assert jnp.allclose(out, ref, atol=1e-4, rtol=1e-4), "mismatch vs reference"

    print("KERNEL_OK")
</pallas_src>

<mosaic_0001>
module attributes {stable_mosaic.version = 11 : i64} {
  func.func @dqn_kernel(%arg0: memref<8x32xf32, #tpu.memory_space<vmem>>, %arg1: memref<64x128xf32, #tpu.memory_space<vmem>>, %arg2: memref<16x128xf32, #tpu.memory_space<vmem>>, %arg3: memref<8x128xf32, #tpu.memory_space<vmem>>) attributes {dimension_semantics = [], scalar_prefetch = 0 : i64, scratch_operands = 0 : i64, tpu.core_type = #tpu.core_type<tc>} {
    %c0 = arith.constant 0 : index
    %c0_0 = arith.constant 0 : index
    %0 = vector.load %arg0[%c0, %c0_0] : memref<8x32xf32, #tpu.memory_space<vmem>>, vector<8x32xf32>
    %c0_1 = arith.constant 0 : index
    %c0_2 = arith.constant 0 : index
    %1 = vector.load %arg1[%c0_1, %c0_2] : memref<64x128xf32, #tpu.memory_space<vmem>>, vector<32x128xf32>
    %c0_3 = arith.constant 0 : index
    %c0_4 = arith.constant 0 : index
    %2 = vector.load %arg2[%c0_3, %c0_4] : memref<16x128xf32, #tpu.memory_space<vmem>>, vector<1x128xf32>
    %c1 = arith.constant 1 : index
    %c0_5 = arith.constant 0 : index
    %3 = vector.load %arg2[%c1, %c0_5] : memref<16x128xf32, #tpu.memory_space<vmem>>, vector<1x128xf32>
    %c2 = arith.constant 2 : index
    %c0_6 = arith.constant 0 : index
    %4 = vector.load %arg2[%c2, %c0_6] : memref<16x128xf32, #tpu.memory_space<vmem>>, vector<1x128xf32>
    %c7 = arith.constant 7 : index
    %c0_7 = arith.constant 0 : index
    %5 = vector.load %arg2[%c7, %c0_7] : memref<16x128xf32, #tpu.memory_space<vmem>>, vector<1x128xf32>
    %cst = arith.constant dense<0.000000e+00> : vector<8x128xf32>
    %6 = tpu.matmul %0, %1, %cst {dimension_numbers = #tpu.dot_dimension_numbers<[1], [0], [0], [1], [0, 0, 1, 1], [], []>} : vector<8x32xf32>, vector<32x128xf32>, vector<8x128xf32> -> vector<8x128xf32>
    %7 = vector.broadcast %2 : vector<1x128xf32> to vector<8x128xf32>
    %8 = arith.addf %6, %7 : vector<8x128xf32>
    %cst_8 = arith.constant dense<0.000000e+00> : vector<128xf32>
    %9 = vector.multi_reduction <add>, %8, %cst_8 [0] : vector<8x128xf32> to vector<128xf32>
    %10 = vector.shape_cast %9 : vector<128xf32> to vector<1x128xf32>
    %cst_9 = arith.constant 8.000000e+00 : f32
    %11 = vector.broadcast %cst_9 : f32 to vector<1x128xf32>
    %12 = arith.divf %10, %11 : vector<1x128xf32>
    %13 = arith.mulf %8, %8 : vector<8x128xf32>
    %cst_10 = arith.constant dense<0.000000e+00> : vector<128xf32>
    %14 = vector.multi_reduction <add>, %13, %cst_10 [0] : vector<8x128xf32> to vector<128xf32>
    %15 = vector.shape_cast %14 : vector<128xf32> to vector<1x128xf32>
    %cst_11 = arith.constant 8.000000e+00 : f32
    %16 = vector.broadcast %cst_11 : f32 to vector<1x128xf32>
    %17 = arith.divf %15, %16 : vector<1x128xf32>
    %18 = arith.mulf %12, %12 : vector<1x128xf32>
    %19 = arith.subf %17, %18 : vector<1x128xf32>
    %cst_12 = arith.constant 0.000000e+00 : f32
    %20 = vector.broadcast %cst_12 : f32 to vector<1x128xf32>
    %21 = arith.maximumf %19, %20 : vector<1x128xf32>
    %cst_13 = arith.constant 9.99999974E-6 : f32
    %22 = vector.broadcast %cst_13 : f32 to vector<1x128xf32>
    %23 = arith.addf %21, %22 : vector<1x128xf32>
    %24 = math.rsqrt %23 : vector<1x128xf32>
    %25 = arith.mulf %3, %24 : vector<1x128xf32>
    %26 = arith.mulf %12, %25 : vector<1x128xf32>
    %27 = arith.subf %4, %26 : vector<1x128xf32>
    %28 = vector.broadcast %25 : vector<1x128xf32> to vector<8x128xf32>
    %29 = arith.mulf %8, %28 : vector<8x128xf32>
    %30 = vector.broadcast %27 : vector<1x128xf32> to vector<8x128xf32>
    %31 = arith.addf %29, %30 : vector<8x128xf32>
    %cst_14 = arith.constant 0.000000e+00 : f32
    %32 = vector.broadcast %cst_14 : f32 to vector<8x128xf32>
    %33 = arith.cmpf ogt, %31, %32 : vector<8x128xf32>
    %34 = vector.broadcast %5 : vector<1x128xf32> to vector<8x128xf32>
    %35 = arith.mulf %34, %31 : vector<8x128xf32>
    %36 = arith.select %33, %31, %35 : vector<8x128xi1>, vector<8x128xf32>
    %37 = vector.extract_strided_slice %36 {offsets = [0, 0], sizes = [8, 16], strides = [1, 1]} : vector<8x128xf32> to vector<8x16xf32>
    %c32 = arith.constant 32 : index
    %c0_15 = arith.constant 0 : index
    %38 = vector.load %arg1[%c32, %c0_15] : memref<64x128xf32, #tpu.memory_space<vmem>>, vector<16x128xf32>
    %c3 = arith.constant 3 : index
    %c0_16 = arith.constant 0 : index
    %39 = vector.load %arg2[%c3, %c0_16] : memref<16x128xf32, #tpu.memory_space<vmem>>, vector<1x128xf32>
    %c4 = arith.constant 4 : index
    %c0_17 = arith.constant 0 : index
    %40 = vector.load %arg2[%c4, %c0_17] : memref<16x128xf32, #tpu.memory_space<vmem>>, vector<1x128xf32>
    %c5 = arith.constant 5 : index
    %c0_18 = arith.constant 0 : index
    %41 = vector.load %arg2[%c5, %c0_18] : memref<16x128xf32, #tpu.memory_space<vmem>>, vector<1x128xf32>
    %c8 = arith.constant 8 : index
    %c0_19 = arith.constant 0 : index
    %42 = vector.load %arg2[%c8, %c0_19] : memref<16x128xf32, #tpu.memory_space<vmem>>, vector<1x128xf32>
    %cst_20 = arith.constant dense<0.000000e+00> : vector<8x128xf32>
    %43 = tpu.matmul %37, %38, %cst_20 {dimension_numbers = #tpu.dot_dimension_numbers<[1], [0], [0], [1], [0, 0, 1, 1], [], []>} : vector<8x16xf32>, vector<16x128xf32>, vector<8x128xf32> -> vector<8x128xf32>
    %44 = vector.broadcast %39 : vector<1x128xf32> to vector<8x128xf32>
    %45 = arith.addf %43, %44 : vector<8x128xf32>
    %cst_21 = arith.constant dense<0.000000e+00> : vector<128xf32>
    %46 = vector.multi_reduction <add>, %45, %cst_21 [0] : vector<8x128xf32> to vector<128xf32>
    %47 = vector.shape_cast %46 : vector<128xf32> to vector<1x128xf32>
    %cst_22 = arith.constant 8.000000e+00 : f32
    %48 = vector.broadcast %cst_22 : f32 to vector<1x128xf32>
    %49 = arith.divf %47, %48 : vector<1x128xf32>
    %50 = arith.mulf %45, %45 : vector<8x128xf32>
    %cst_23 = arith.constant dense<0.000000e+00> : vector<128xf32>
    %51 = vector.multi_reduction <add>, %50, %cst_23 [0] : vector<8x128xf32> to vector<128xf32>
    %52 = vector.shape_cast %51 : vector<128xf32> to vector<1x128xf32>
    %cst_24 = arith.constant 8.000000e+00 : f32
    %53 = vector.broadcast %cst_24 : f32 to vector<1x128xf32>
    %54 = arith.divf %52, %53 : vector<1x128xf32>
    %55 = arith.mulf %49, %49 : vector<1x128xf32>
    %56 = arith.subf %54, %55 : vector<1x128xf32>
    %cst_25 = arith.constant 0.000000e+00 : f32
    %57 = vector.broadcast %cst_25 : f32 to vector<1x128xf32>
    %58 = arith.maximumf %56, %57 : vector<1x128xf32>
    %cst_26 = arith.constant 9.99999974E-6 : f32
    %59 = vector.broadcast %cst_26 : f32 to vector<1x128xf32>
    %60 = arith.addf %58, %59 : vector<1x128xf32>
    %61 = math.rsqrt %60 : vector<1x128xf32>
    %62 = arith.mulf %40, %61 : vector<1x128xf32>
    %63 = arith.mulf %49, %62 : vector<1x128xf32>
    %64 = arith.subf %41, %63 : vector<1x128xf32>
    %65 = vector.broadcast %62 : vector<1x128xf32> to vector<8x128xf32>
    %66 = arith.mulf %45, %65 : vector<8x128xf32>
    %67 = vector.broadcast %64 : vector<1x128xf32> to vector<8x128xf32>
    %68 = arith.addf %66, %67 : vector<8x128xf32>
    %cst_27 = arith.constant 0.000000e+00 : f32
    %69 = vector.broadcast %cst_27 : f32 to vector<8x128xf32>
    %70 = arith.cmpf ogt, %68, %69 : vector<8x128xf32>
    %71 = vector.broadcast %42 : vector<1x128xf32> to vector<8x128xf32>
    %72 = arith.mulf %71, %68 : vector<8x128xf32>
    %73 = arith.select %70, %68, %72 : vector<8x128xi1>, vector<8x128xf32>
    %74 = vector.extract_strided_slice %73 {offsets = [0, 0], sizes = [8, 16], strides = [1, 1]} : vector<8x128xf32> to vector<8x16xf32>
    %c48 = arith.constant 48 : index
    %c0_28 = arith.constant 0 : index
    %75 = vector.load %arg1[%c48, %c0_28] : memref<64x128xf32, #tpu.memory_space<vmem>>, vector<16x128xf32>
    %cst_29 = arith.constant dense<0.000000e+00> : vector<8x128xf32>
    %76 = tpu.matmul %74, %75, %cst_29 {dimension_numbers = #tpu.dot_dimension_numbers<[1], [0], [0], [1], [0, 0, 1, 1], [], []>} : vector<8x16xf32>, vector<16x128xf32>, vector<8x128xf32> -> vector<8x128xf32>
    %c6 = arith.constant 6 : index
    %c0_30 = arith.constant 0 : index
    %77 = vector.load %arg2[%c6, %c0_30] : memref<16x128xf32, #tpu.memory_space<vmem>>, vector<1x128xf32>
    %78 = vector.broadcast %77 : vector<1x128xf32> to vector<8x128xf32>
    %79 = arith.addf %76, %78 : vector<8x128xf32>
    %c0_31 = arith.constant 0 : index
    %c0_32 = arith.constant 0 : index
    %80 = vector.load %arg3[%c0_31, %c0_32] : memref<8x128xf32, #tpu.memory_space<vmem>>, vector<8x128xf32>
    tpu.vector_store %arg3[%c0_31, %c0_32], %79 {strides = array<i32>} : memref<8x128xf32, #tpu.memory_space<vmem>>, vector<8x128xf32>,
    return
  }
}

</mosaic_0001>

<llo_original>
// kernel: tpu_custom_call.1
$region0: #{tpu_custom_call.1}
  #allocation0 [shape = 'u32[]', space=smem, size = 0x4, offset = 0x4, fixed_abs, tag = 'smem constant byte address 0x4 - core index']
  #allocation1 [shape = 'u32[144,128]{1,0:T(1,128)}', space=vmem, size = 0x12000, scoped, tag = 'internal scratch']
  %s0 = inlined_call_operand.hbm [shape: f32[8,32], index: 0, kind: input, shape index: {}]
  %s1 = inlined_call_operand.hbm [shape: f32[64,128], index: 1, kind: input, shape index: {}]
  %s2 = inlined_call_operand.hbm [shape: f32[16,128], index: 2, kind: input, shape index: {}]
  %s3 = inlined_call_operand.hbm [shape: f32[8,128], index: 3, kind: output, shape index: {}]
  %s4 = sld [smem:[#allocation0]]
  $region34: #{tpu_custom_call.1} parent=0
    _
  %s6 = ssub.s32 1, %s4
  %s7 = scalar_select 0, %s6, %s4
  $region1: #{tpu_custom_call.1} parent=0
    #allocation2 [shape = 'u8[4096]{0}', space=vmem, size = 0x1000, scoped, tag = 'input window, operand 0, single buffered']
    #allocation3 [shape = 's32[1]{0}', space=sflag, size = 0x4, scoped, tag = 'scoped memory for tpu_custom_call.1']
    #allocation4 [shape = 's32[1]{0}', space=sflag, size = 0x4, scoped, tag = 'scoped memory for tpu_custom_call.1']
    #allocation5 [shape = 'u8[32768]{0}', space=vmem, size = 0x8000, scoped, tag = 'input window, operand 1, single buffered']
    #allocation6 [shape = 's32[1]{0}', space=sflag, size = 0x4, scoped, tag = 'scoped memory for tpu_custom_call.1']
    #allocation7 [shape = 'u8[8192]{0}', space=vmem, size = 0x2000, scoped, tag = 'input window, operand 2, single buffered']
    #allocation8 [shape = 'u8[4096]{0}', space=vmem, size = 0x1000, scoped, tag = 'output window, operand 0, single buffered']
    %8 = vsyncpa [#allocation3], 0
    %9 = vsyncpa [#allocation6], 0
    %10 = vsyncpa [#allocation4], 0
    // Predicated region
    $region2: #{tpu_custom_call.1} parent=1 // pred_check
      _
    $region3: #{tpu_custom_call.1} parent=1 // pred_check_branch
      %12 = sbr.rel (0) target = $region5
    $region4: #{tpu_custom_call.1} parent=1 // pred_region
      %s14 = ssub.s32 128, 128
      %15 = vsyncadd [#allocation3], %s14
      %s17 = sshll.u32 [#allocation2], 4
      %s18 = int_to_ptr.vmem [resolvable:$true] %s17
      %20 = dma.hbm_to_vmem [thread:$0]  %s0, 128, %s18, [#allocation3]
    $region5: #{tpu_custom_call.1} parent=1 // pred_fallthru
      _
    // Predicated region
    $region6: #{tpu_custom_call.1} parent=1 // pred_check
      _
    $region7: #{tpu_custom_call.1} parent=1 // pred_check_branch
      %22 = sbr.rel (0) target = $region9
    $region8: #{tpu_custom_call.1} parent=1 // pred_region
      %s24 = ssub.s32 1024, 1024
      %25 = vsyncadd [#allocation6], %s24
      %s26 = sshll.u32 [#allocation5], 4
      %s27 = int_to_ptr.vmem [resolvable:$true] %s26
      %32 = dma.hbm_to_vmem [thread:$0]  %s1, 1024, %s27, [#allocation6], 128, 128, 8
    $region9: #{tpu_custom_call.1} parent=1 // pred_fallthru
      _
    // Predicated region
    $region10: #{tpu_custom_call.1} parent=1 // pred_check
      _
    $region11: #{tpu_custom_call.1} parent=1 // pred_check_branch
      %34 = sbr.rel (0) target = $region13
    $region12: #{tpu_custom_call.1} parent=1 // pred_region
      %s36 = ssub.s32 256, 256
      %37 = vsyncadd [#allocation6], %s36
      %s38 = sshll.u32 [#allocation7], 4
      %s39 = int_to_ptr.vmem [resolvable:$true] %s38
      %44 = dma.hbm_to_vmem [thread:$0]  %s2, 256, %s39, [#allocation6], 128, 128, 8
    $region13: #{tpu_custom_call.1} parent=1 // pred_fallthru
      _
    // Predicated region
    $region14: #{tpu_custom_call.1} parent=1 // pred_check
      _
    $region15: #{tpu_custom_call.1} parent=1 // pred_check_branch
      %46 = sbr.rel (0) target = $region17
    $region16: #{tpu_custom_call.1} parent=1 // pred_region
      %47 = dma.done [#allocation3], 128
    $region17: #{tpu_custom_call.1} parent=1 // pred_fallthru
      _
    // Predicated region
    $region18: #{tpu_custom_call.1} parent=1 // pred_check
      _
    $region19: #{tpu_custom_call.1} parent=1 // pred_check_branch
      %49 = sbr.rel (0) target = $region21
    $region20: #{tpu_custom_call.1} parent=1 // pred_region
      %50 = dma.done [#allocation6], 1024
    $region21: #{tpu_custom_call.1} parent=1 // pred_fallthru
      _
    // Predicated region
    $region22: #{tpu_custom_call.1} parent=1 // pred_check
      _
    $region23: #{tpu_custom_call.1} parent=1 // pred_check_branch
      %52 = sbr.rel (0) target = $region25
    $region24: #{tpu_custom_call.1} parent=1 // pred_region
      %53 = dma.done [#allocation6], 256
    $region25: #{tpu_custom_call.1} parent=1 // pred_fallthru
      _
    %v54 = vld [vmem:[#allocation2] sm:$0xff]
    %v55 = vld [vmem:[#allocation5] sm:$0xff]
    %v56 = vld [vmem:[#allocation5 + $0x8] sm:$0xff]
    %v57 = vld [vmem:[#allocation5 + $0x10] sm:$0xff]
    %v58 = vld [vmem:[#allocation5 + $0x18] sm:$0xff]
    %v59 = vld [vmem:[#allocation7] sm:$0x1]
    %v60 = vld [vmem:[#allocation7 + $0x1] sm:$0x1]
    %v61 = vld [vmem:[#allocation7 + $0x2] sm:$0x1]
    %v62 = vld [vmem:[#allocation7 + $0x7] sm:$0x1]
    %v63 = vlaneseq
    %v64 = vshrl.u32 %v63, 7
    %v65 = vsub.s32 0, %v64
    %v66 = vrot.slane %v59, %v65
    %vm67 = vcmask 261120
    %v69 = vsel %vm67, %v54, 0
    %71 = vmatprep.subr.mxu0 0.0
    %72 = vmatpush1.msra.mxu0 %v55
    %73 = vmatprep.subr.mxu0 0.0
    %74 = vmatpush1.msra.mxu0 %v56
    %75 = vmatprep.subr.mxu0 0.0
    %76 = vmatpush1.msra.mxu0 %v57
    %77 = vmatprep.subr.mxu0 0.0
    %78 = vmatpush1.msra.mxu0 %v58
    %79 = vmatprep.subr.mxu0 0.0
    %80 = vmatpush1.msra.mxu0 0.0
    %81 = vmatprep.subr.mxu0 0.0
    %82 = vmatpush1.msra.mxu0 0.0
    %83 = vmatprep.subr.mxu0 0.0
    %84 = vmatpush1.msra.mxu0 0.0
    %85 = vmatprep.subr.mxu0 0.0
    %86 = vmatpush1.msra.mxu0 0.0
    %87 = vmatprep.subr.mxu0 0.0
    %88 = vmatpush1.msra.mxu0 0.0
    %89 = vmatprep.subr.mxu0 0.0
    %90 = vmatpush1.msra.mxu0 0.0
    %91 = vmatprep.subr.mxu0 0.0
    %92 = vmatpush1.msra.mxu0 0.0
    %93 = vmatprep.subr.mxu0 0.0
    %94 = vmatpush1.msra.mxu0 0.0
    %95 = vmatprep.subr.mxu0 0.0
    %96 = vmatpush1.msra.mxu0 0.0
    %97 = vmatprep.subr.mxu0 0.0
    %98 = vmatpush1.msra.mxu0 0.0
    %99 = vmatprep.subr.mxu0 0.0
    %100 = vmatpush1.msra.mxu0 0.0
    %101 = vmatprep.subr.mxu0 0.0
    %102 = vmatpush1.msra.mxu0 0.0
    %103 = vmatprep.subr.mxu0 0.0
    %104 = vmatpush1.msra.mxu0 0.0
    %105 = vmatprep.subr.mxu0 0.0
    %106 = vmatpush1.msra.mxu0 0.0
    %107 = vmatprep.subr.mxu0 0.0
    %108 = vmatpush1.msra.mxu0 0.0
    %109 = vmatprep.subr.mxu0 0.0
    %110 = vmatpush1.msra.mxu0 0.0
    %111 = vmatprep.subr.mxu0 0.0
    %112 = vmatpush1.msra.mxu0 0.0
    %113 = vmatprep.subr.mxu0 0.0
    %114 = vmatpush1.msra.mxu0 0.0
    %115 = vmatprep.subr.mxu0 0.0
    %116 = vmatpush1.msra.mxu0 0.0
    %117 = vmatprep.subr.mxu0 0.0
    %118 = vmatpush1.msra.mxu0 0.0
    %119 = vmatprep.subr.mxu0 0.0
    %120 = vmatpush1.msra.mxu0 0.0
    %121 = vmatprep.subr.mxu0 0.0
    %122 = vmatpush1.msra.mxu0 0.0
    %123 = vmatprep.subr.mxu0 0.0
    %124 = vmatpush1.msra.mxu0 0.0
    %125 = vmatprep.subr.mxu0 0.0
    %126 = vmatpush1.msra.mxu0 0.0
    %127 = vmatprep.subr.mxu0 0.0
    %128 = vmatpush1.msra.mxu0 0.0
    %129 = vmatprep.subr.mxu0 0.0
    %130 = vmatpush1.msra.mxu0 0.0
    %131 = vmatprep.subr.mxu0 0.0
    %132 = vmatpush1.msra.mxu0 0.0
    %133 = vmatprep.subr.mxu0 0.0
    %134 = vmatpush1.msra.mxu0 0.0
    %135 = vmatprep.mubr.f32.mxu0 0.0
    %136 = vmatmul.mubr.f32.gmra.mrb[0].mxu0 %v69
    %v137 = vpop.f32.mrb[0].mxu0
    %v138 = vadd.f32 %v66, %v137
    %v139 = vpop.f32.mrb[0].mxu0
    %140 = vdwg.mxu0
    %v141 = vrot.slane %v138, 4
    %v142 = vadd.f32 %v138, %v141
    %v143 = vrot.slane %v142, 2
    %v144 = vadd.f32 %v142, %v143
    %v145 = vrot.slane %v144, 1
    %v146 = vadd.f32 %v144, %v145
    %v147 = vrcp.pop 8.0
    %v148 = vmul.f32 %v146, %v147
    %v149 = vmul.f32 %v138, %v138
    %v150 = vrot.slane %v149, 4
    %v151 = vadd.f32 %v149, %v150
    %v152 = vrot.slane %v151, 2
    %v153 = vadd.f32 %v151, %v152
    %v154 = vrot.slane %v153, 1
    %v155 = vadd.f32 %v153, %v154
    %v156 = vmul.f32 %v155, %v147
    %v157 = vmul.f32 %v148, %v148
    %v158 = vsub.f32 %v156, %v157
    %v159 = vmax.f32 %v158, 0.0
    %v160 = vadd.f32 %v159, 1e-05
    %v161 = vrsqrt.pop %v160
    %v162 = vmul.f32 %v60, %v161
    %v163 = vmul.f32 %v148, %v162
    %v164 = vsub.f32 %v61, %v163
    %v165 = vlaneseq
    %v166 = vshrl.u32 %v165, 7
    %v167 = vsub.s32 0, %v166
    %v168 = vrot.slane %v162, %v167
    %v169 = vmul.f32 %v138, %v168
    %v170 = vlaneseq
    %v171 = vshrl.u32 %v170, 7
    %v172 = vsub.s32 0, %v171
    %v173 = vrot.slane %v164, %v172
    %v174 = vadd.f32 %v169, %v173
    %vm175 = vcmp.gt.f32.partialorder %v174, 0.0
    %v176 = vlaneseq
    %v177 = vshrl.u32 %v176, 7
    %v178 = vsub.s32 0, %v177
    %v179 = vrot.slane %v62, %v178
    %v180 = vmul.f32 %v179, %v174
    %v181 = vsel %vm175, %v174, %v180
    %v182 = vld [vmem:[#allocation5 + $0x20] sm:$0xff]
    %v183 = vld [vmem:[#allocation5 + $0x28] sm:$0xff]
    %v184 = vld [vmem:[#allocation7 + $0x3] sm:$0x1]
    %v185 = vld [vmem:[#allocation7 + $0x4] sm:$0x1]
    %v186 = vld [vmem:[#allocation7 + $0x5] sm:$0x1]
    %v187 = vld [vmem:[#allocation7 + $0x8] sm:$0x1]
    %v188 = vlaneseq
    %v189 = vshrl.u32 %v188, 7
    %v190 = vsub.s32 0, %v189
    %v191 = vrot.slane %v184, %v190
    %vm192 = vcmask 130048
    %v194 = vsel %vm192, %v181, 0
    %196 = vmatprep.subr.mxu0 0.0
    %197 = vmatpush1.msra.mxu0 %v182
    %198 = vmatprep.subr.mxu0 0.0
    %199 = vmatpush1.msra.mxu0 %v183
    %200 = vmatprep.subr.mxu0 0.0
    %201 = vmatpush1.msra.mxu0 0.0
    %202 = vmatprep.subr.mxu0 0.0
    %203 = vmatpush1.msra.mxu0 0.0
    %204 = vmatprep.subr.mxu0 0.0
    %205 = vmatpush1.msra.mxu0 0.0
    %206 = vmatprep.subr.mxu0 0.0
    %207 = vmatpush1.msra.mxu0 0.0
    %208 = vmatprep.subr.mxu0 0.0
    %209 = vmatpush1.msra.mxu0 0.0
    %210 = vmatprep.subr.mxu0 0.0
    %211 = vmatpush1.msra.mxu0 0.0
    %212 = vmatprep.subr.mxu0 0.0
    %213 = vmatpush1.msra.mxu0 0.0
    %214 = vmatprep.subr.mxu0 0.0
    %215 = vmatpush1.msra.mxu0 0.0
    %216 = vmatprep.subr.mxu0 0.0
    %217 = vmatpush1.msra.mxu0 0.0
    %218 = vmatprep.subr.mxu0 0.0
    %219 = vmatpush1.msra.mxu0 0.0
    %220 = vmatprep.subr.mxu0 0.0
    %221 = vmatpush1.msra.mxu0 0.0
    %222 = vmatprep.subr.mxu0 0.0
    %223 = vmatpush1.msra.mxu0 0.0
    %224 = vmatprep.subr.mxu0 0.0
    %225 = vmatpush1.msra.mxu0 0.0
    %226 = vmatprep.subr.mxu0 0.0
    %227 = vmatpush1.msra.mxu0 0.0
    %228 = vmatprep.subr.mxu0 0.0
    %229 = vmatpush1.msra.mxu0 0.0
    %230 = vmatprep.subr.mxu0 0.0
    %231 = vmatpush1.msra.mxu0 0.0
    %232 = vmatprep.subr.mxu0 0.0
    %233 = vmatpush1.msra.mxu0 0.0
    %234 = vmatprep.subr.mxu0 0.0
    %235 = vmatpush1.msra.mxu0 0.0
    %236 = vmatprep.subr.mxu0 0.0
    %237 = vmatpush1.msra.mxu0 0.0
    %238 = vmatprep.subr.mxu0 0.0
    %239 = vmatpush1.msra.mxu0 0.0
    %240 = vmatprep.subr.mxu0 0.0
    %241 = vmatpush1.msra.mxu0 0.0
    %242 = vmatprep.subr.mxu0 0.0
    %243 = vmatpush1.msra.mxu0 0.0
    %244 = vmatprep.subr.mxu0 0.0
    %245 = vmatpush1.msra.mxu0 0.0
    %246 = vmatprep.subr.mxu0 0.0
    %247 = vmatpush1.msra.mxu0 0.0
    %248 = vmatprep.subr.mxu0 0.0
    %249 = vmatpush1.msra.mxu0 0.0
    %250 = vmatprep.subr.mxu0 0.0
    %251 = vmatpush1.msra.mxu0 0.0
    %252 = vmatprep.subr.mxu0 0.0
    %253 = vmatpush1.msra.mxu0 0.0
    %254 = vmatprep.subr.mxu0 0.0
    %255 = vmatpush1.msra.mxu0 0.0
    %256 = vmatprep.subr.mxu0 0.0
    %257 = vmatpush1.msra.mxu0 0.0
    %258 = vmatprep.subr.mxu0 0.0
    %259 = vmatpush1.msra.mxu0 0.0
    %260 = vmatprep.mubr.f32.mxu0 0.0
    %261 = vmatmul.mubr.f32.gmra.mrb[0].mxu0 %v194
    %v262 = vpop.f32.mrb[0].mxu0
    %v263 = vadd.f32 %v191, %v262
    %v264 = vpop.f32.mrb[0].mxu0
    %265 = vdwg.mxu0
    %v266 = vrot.slane %v263, 4
    %v267 = vadd.f32 %v263, %v266
    %v268 = vrot.slane %v267, 2
    %v269 = vadd.f32 %v267, %v268
    %v270 = vrot.slane %v269, 1
    %v271 = vadd.f32 %v269, %v270
    %v272 = vmul.f32 %v271, %v147
    %v273 = vmul.f32 %v263, %v263
    %v274 = vrot.slane %v273, 4
    %v275 = vadd.f32 %v273, %v274
    %v276 = vrot.slane %v275, 2
    %v277 = vadd.f32 %v275, %v276
    %v278 = vrot.slane %v277, 1
    %v279 = vadd.f32 %v277, %v278
    %v280 = vmul.f32 %v279, %v147
    %v281 = vmul.f32 %v272, %v272
    %v282 = vsub.f32 %v280, %v281
    %v283 = vmax.f32 %v282, 0.0
    %v284 = vadd.f32 %v283, 1e-05
    %v285 = vrsqrt.pop %v284
    %v286 = vmul.f32 %v185, %v285
    %v287 = vmul.f32 %v272, %v286
    %v288 = vsub.f32 %v186, %v287
    %v289 = vlaneseq
    %v290 = vshrl.u32 %v289, 7
    %v291 = vsub.s32 0, %v290
    %v292 = vrot.slane %v286, %v291
    %v293 = vmul.f32 %v263, %v292
    %v294 = vlaneseq
    %v295 = vshrl.u32 %v294, 7
    %v296 = vsub.s32 0, %v295
    %v297 = vrot.slane %v288, %v296
    %v298 = vadd.f32 %v293, %v297
    %vm299 = vcmp.gt.f32.partialorder %v298, 0.0
    %v300 = vlaneseq
    %v301 = vshrl.u32 %v300, 7
    %v302 = vsub.s32 0, %v301
    %v303 = vrot.slane %v187, %v302
    %v304 = vmul.f32 %v303, %v298
    %v305 = vsel %vm299, %v298, %v304
    %v306 = vld [vmem:[#allocation5 + $0x30] sm:$0xff]
    %v307 = vld [vmem:[#allocation5 + $0x38] sm:$0xff]
    %v308 = vld [vmem:[#allocation7 + $0x6] sm:$0x1]
    %v309 = vlaneseq
    %v310 = vshrl.u32 %v309, 7
    %v311 = vsub.s32 0, %v310
    %v312 = vrot.slane %v308, %v311
    %v314 = vsel %vm192, %v305, 0
    %316 = vmatprep.subr.mxu0 0.0
    %317 = vmatpush1.msra.mxu0 %v306
    %318 = vmatprep.subr.mxu0 0.0
    %319 = vmatpush1.msra.mxu0 %v307
    %320 = vmatprep.subr.mxu0 0.0
    %321 = vmatpush1.msra.mxu0 0.0
    %322 = vmatprep.subr.mxu0 0.0
    %323 = vmatpush1.msra.mxu0 0.0
    %324 = vmatprep.subr.mxu0 0.0
    %325 = vmatpush1.msra.mxu0 0.0
    %326 = vmatprep.subr.mxu0 0.0
    %327 = vmatpush1.msra.mxu0 0.0
    %328 = vmatprep.subr.mxu0 0.0
    %329 = vmatpush1.msra.mxu0 0.0
    %330 = vmatprep.subr.mxu0 0.0
    %331 = vmatpush1.msra.mxu0 0.0
    %332 = vmatprep.subr.mxu0 0.0
    %333 = vmatpush1.msra.mxu0 0.0
    %334 = vmatprep.subr.mxu0 0.0
    %335 = vmatpush1.msra.mxu0 0.0
    %336 = vmatprep.subr.mxu0 0.0
    %337 = vmatpush1.msra.mxu0 0.0
    %338 = vmatprep.subr.mxu0 0.0
    %339 = vmatpush1.msra.mxu0 0.0
    %340 = vmatprep.subr.mxu0 0.0
    %341 = vmatpush1.msra.mxu0 0.0
    %342 = vmatprep.subr.mxu0 0.0
    %343 = vmatpush1.msra.mxu0 0.0
    %344 = vmatprep.subr.mxu0 0.0
    %345 = vmatpush1.msra.mxu0 0.0
    %346 = vmatprep.subr.mxu0 0.0
    %347 = vmatpush1.msra.mxu0 0.0
    %348 = vmatprep.subr.mxu0 0.0
    %349 = vmatpush1.msra.mxu0 0.0
    %350 = vmatprep.subr.mxu0 0.0
    %351 = vmatpush1.msra.mxu0 0.0
    %352 = vmatprep.subr.mxu0 0.0
    %353 = vmatpush1.msra.mxu0 0.0
    %354 = vmatprep.subr.mxu0 0.0
    %355 = vmatpush1.msra.mxu0 0.0
    %356 = vmatprep.subr.mxu0 0.0
    %357 = vmatpush1.msra.mxu0 0.0
    %358 = vmatprep.subr.mxu0 0.0
    %359 = vmatpush1.msra.mxu0 0.0
    %360 = vmatprep.subr.mxu0 0.0
    %361 = vmatpush1.msra.mxu0 0.0
    %362 = vmatprep.subr.mxu0 0.0
    %363 = vmatpush1.msra.mxu0 0.0
    %364 = vmatprep.subr.mxu0 0.0
    %365 = vmatpush1.msra.mxu0 0.0
    %366 = vmatprep.subr.mxu0 0.0
    %367 = vmatpush1.msra.mxu0 0.0
    %368 = vmatprep.subr.mxu0 0.0
    %369 = vmatpush1.msra.mxu0 0.0
    %370 = vmatprep.subr.mxu0 0.0
    %371 = vmatpush1.msra.mxu0 0.0
    %372 = vmatprep.subr.mxu0 0.0
    %373 = vmatpush1.msra.mxu0 0.0
    %374 = vmatprep.subr.mxu0 0.0
    %375 = vmatpush1.msra.mxu0 0.0
    %376 = vmatprep.subr.mxu0 0.0
    %377 = vmatpush1.msra.mxu0 0.0
    %378 = vmatprep.subr.mxu0 0.0
    %379 = vmatpush1.msra.mxu0 0.0
    %380 = vmatprep.mubr.f32.mxu0 0.0
    %381 = vmatmul.mubr.f32.gmra.mrb[0].mxu0 %v314
    %v382 = vpop.f32.mrb[0].mxu0
    %v383 = vadd.f32 %v312, %v382
    %v384 = vpop.f32.mrb[0].mxu0
    %385 = vdwg.mxu0
    %386 = vst [vmem:[#allocation8] sm:$0xff] %v383
    // Predicated region
    $region26: #{tpu_custom_call.1} parent=1 // pred_check
      _
    $region27: #{tpu_custom_call.1} parent=1 // pred_check_branch
      %388 = sbr.rel (0) target = $region29
    $region28: #{tpu_custom_call.1} parent=1 // pred_region
      %s390 = ssub.s32 128, 128
      %391 = vsyncadd [#allocation4], %s390
      %s393 = sshll.u32 [#allocation8], 4
      %s394 = int_to_ptr.vmem [resolvable:$true] %s393
      %396 = dma.vmem_to_hbm [thread:$0]  %s394, 128, %s3, [#allocation4]
    $region29: #{tpu_custom_call.1} parent=1 // pred_fallthru
      _
    // Predicated region
    $region30: #{tpu_custom_call.1} parent=1 // pred_check
      _
    $region31: #{tpu_custom_call.1} parent=1 // pred_check_branch
      %398 = sbr.rel (0) target = $region33
    $region32: #{tpu_custom_call.1} parent=1 // pred_region
      %399 = dma.done [#allocation4], 128
    $region33: #{tpu_custom_call.1} parent=1 // pred_fallthru
      _
    %400 = vsyncpa [#allocation3], 1
    %401 = vsyncpa [#allocation6], 1
    %402 = vsyncpa [#allocation4], 1

</llo_original>
